<compile_context>
chip_gen: v7x
topology: tpu7x:2x2x1
jax: 0.10.0
libtpu: 0.0.40
codegen_flags: <defaults>
</compile_context>

<pallas_src>
import jax
import jax.numpy as jnp
from jax.experimental import pallas as pl
from jax.experimental.pallas import tpu as pltpu


def add_conv1x1_kernel(a_ref, b_ref, w_ref, o_ref):
    # a_ref, b_ref: (1, C_in, H*W) activations; w_ref: (C_out, C_in) weight;
    # o_ref: (1, C_out, H*W) output.
    x = a_ref[0] + b_ref[0]                               # fused add (VPU), f32
    o_ref[0] = jnp.dot(                                   # 1x1 conv == matmul (MXU)
        w_ref[...], x, preferred_element_type=jnp.float32
    ).astype(o_ref.dtype)


def add_conv1x1(x103, x111, weight):
    """x103, x111: (N, C_in, H, W) float32. weight: (C_out, C_in, 1, 1) float32."""
    N, C_in, H, W = x103.shape
    C_out = weight.shape[0]
    HW = H * W

    # Pure reshapes only — no transposes / relayouts in the wrapper.
    a3d = x103.reshape(N, C_in, HW)
    b3d = x111.reshape(N, C_in, HW)
    w2d = weight.reshape(C_out, C_in)

    # Advisory cost hint so XLA schedules this tiny custom call sensibly.
    flops = 2 * N * HW * C_in * C_out
    bytes_accessed = (2 * N * C_in * HW + C_out * C_in + N * C_out * HW) * 4

    out3d = pl.pallas_call(
        add_conv1x1_kernel,
        out_shape=jax.ShapeDtypeStruct((N, C_out, HW), jnp.float32),
        grid=(N,),  # one grid step per batch element (N == 1 here)
        in_specs=[
            pl.BlockSpec((1, C_in, HW), lambda n: (n, 0, 0)),
            pl.BlockSpec((1, C_in, HW), lambda n: (n, 0, 0)),
            pl.BlockSpec((C_out, C_in), lambda n: (0, 0)),
        ],
        out_specs=pl.BlockSpec((1, C_out, HW), lambda n: (n, 0, 0)),
        compiler_params=pltpu.CompilerParams(
            dimension_semantics=("parallel",),
        ),
        cost_estimate=pl.CostEstimate(
            flops=flops, transcendentals=0, bytes_accessed=bytes_accessed
        ),
    )(a3d, b3d, w2d)

    # (N, C_out, H*W) -> NCHW, again a pure reshape (no transpose).
    return out3d.reshape(N, C_out, H, W)


if __name__ == "__main__":
    key = jax.random.PRNGKey(0)
    k1, k2, k3 = jax.random.split(key, 3)

    # Shapes implied by the module's forward pass (already small).
    x103 = jax.random.normal(k1, (1, 96, 14, 14), dtype=jnp.float32)
    x111 = jax.random.normal(k2, (1, 96, 14, 14), dtype=jnp.float32)
    # Conv2d(96, 576, kernel_size=1, bias=False) weight, deterministic init.
    weight = jax.random.normal(k3, (576, 96, 1, 1), dtype=jnp.float32) * 0.02

    out = add_conv1x1(x103, x111, weight)
    out = jax.block_until_ready(out)

    # Reference in plain JAX (1x1 conv == channel matmul).
    x_sum = x103 + x111
    ref = jnp.einsum("nchw,oc->nohw", x_sum, weight.reshape(576, 96))
    assert out.shape == (1, 576, 14, 14)
    assert jnp.allclose(out, ref, atol=1e-4, rtol=1e-4)

    print("KERNEL_OK")
</pallas_src>

<mosaic_0001>
module attributes {stable_mosaic.version = 11 : i64} {
  func.func @add_conv1x1_kernel(%arg0: i32, %arg1: memref<1x96x196xf32, #tpu.memory_space<vmem>>, %arg2: memref<1x96x196xf32, #tpu.memory_space<vmem>>, %arg3: memref<576x96xf32, #tpu.memory_space<vmem>>, %arg4: memref<1x576x196xf32, #tpu.memory_space<vmem>>) attributes {dimension_semantics = [#tpu.dimension_semantics<parallel>], iteration_bounds = array<i64: 1>, scalar_prefetch = 0 : i64, scratch_operands = 0 : i64, tpu.core_type = #tpu.core_type<tc>, window_params = [{transform_indices = @transform_0, window_bounds = array<i64: 1, 96, 196>}, {transform_indices = @transform_1, window_bounds = array<i64: 1, 96, 196>}, {pipeline_mode = #tpu.pipeline_mode<synchronous>, transform_indices = @transform_2, window_bounds = array<i64: 576, 96>}, {transform_indices = @transform_3, window_bounds = array<i64: 1, 576, 196>}]} {
    %c0 = arith.constant 0 : index
    %c0_0 = arith.constant 0 : index
    %c0_1 = arith.constant 0 : index
    %0 = vector.load %arg1[%c0, %c0_0, %c0_1] : memref<1x96x196xf32, #tpu.memory_space<vmem>>, vector<1x96x196xf32>
    %1 = vector.shape_cast %0 : vector<1x96x196xf32> to vector<96x196xf32>
    %c0_2 = arith.constant 0 : index
    %c0_3 = arith.constant 0 : index
    %c0_4 = arith.constant 0 : index
    %2 = vector.load %arg2[%c0_2, %c0_3, %c0_4] : memref<1x96x196xf32, #tpu.memory_space<vmem>>, vector<1x96x196xf32>
    %3 = vector.shape_cast %2 : vector<1x96x196xf32> to vector<96x196xf32>
    %4 = arith.addf %1, %3 : vector<96x196xf32>
    %c0_5 = arith.constant 0 : index
    %c0_6 = arith.constant 0 : index
    %5 = vector.load %arg3[%c0_5, %c0_6] : memref<576x96xf32, #tpu.memory_space<vmem>>, vector<576x96xf32>
    %cst = arith.constant dense<0.000000e+00> : vector<576x196xf32>
    %6 = tpu.matmul %5, %4, %cst {dimension_numbers = #tpu.dot_dimension_numbers<[1], [0], [0], [1], [0, 0, 1, 1], [], []>} : vector<576x96xf32>, vector<96x196xf32>, vector<576x196xf32> -> vector<576x196xf32>
    %c0_7 = arith.constant 0 : index
    %c0_8 = arith.constant 0 : index
    %c0_9 = arith.constant 0 : index
    %7 = vector.load %arg4[%c0_7, %c0_8, %c0_9] : memref<1x576x196xf32, #tpu.memory_space<vmem>>, vector<1x576x196xf32>
    %8 = vector.shape_cast %7 : vector<1x576x196xf32> to vector<576x196xf32>
    %9 = vector.shape_cast %6 : vector<576x196xf32> to vector<1x576x196xf32>
    tpu.vector_store %arg4[%c0_7, %c0_8, %c0_9], %9 {strides = array<i32>} : memref<1x576x196xf32, #tpu.memory_space<vmem>>, vector<1x576x196xf32>,
    return
  }
  func.func @transform_0(%arg0: i32) -> (i32, i32, i32) {
    %c0_i32 = arith.constant 0 : i32
    %c0_i32_0 = arith.constant 0 : i32
    %c0_i32_1 = arith.constant 0 : i32
    return %arg0, %c0_i32, %c0_i32_0 : i32, i32, i32
  }
  func.func @transform_1(%arg0: i32) -> (i32, i32, i32) {
    %c0_i32 = arith.constant 0 : i32
    %c0_i32_0 = arith.constant 0 : i32
    %c0_i32_1 = arith.constant 0 : i32
    return %arg0, %c0_i32, %c0_i32_0 : i32, i32, i32
  }
  func.func @transform_2(%arg0: i32) -> (i32, i32) {
    %c0_i32 = arith.constant 0 : i32
    %c0_i32_0 = arith.constant 0 : i32
    %c0_i32_1 = arith.constant 0 : i32
    return %c0_i32, %c0_i32_0 : i32, i32
  }
  func.func @transform_3(%arg0: i32) -> (i32, i32, i32) {
    %c0_i32 = arith.constant 0 : i32
    %c0_i32_0 = arith.constant 0 : i32
    %c0_i32_1 = arith.constant 0 : i32
    return %arg0, %c0_i32, %c0_i32_0 : i32, i32, i32
  }
}

</mosaic_0001>

<llo_original>
// kernel: tpu_custom_call.1
$region0: #{tpu_custom_call.1}
  #allocation0 [shape = 'u32[]', space=smem, size = 0x4, offset = 0x4, fixed_abs, tag = 'smem constant byte address 0x4 - core index']
  #allocation1 [shape = 'u32[144,128]{1,0:T(1,128)}', space=vmem, size = 0x12000, scoped, tag = 'internal scratch']
  %s0 = inlined_call_operand.vmem [shape: f32[1,96,196], index: 0, kind: input, shape index: {}]
  %s1 = inlined_call_operand.vmem [shape: f32[1,96,196], index: 1, kind: input, shape index: {}]
  %s2 = inlined_call_operand.vmem [shape: f32[576,96], index: 2, kind: input, shape index: {}]
  %s3 = inlined_call_operand.vmem [shape: f32[1,576,196], index: 3, kind: output, shape index: {}]
  %s4 = sld [smem:[#allocation0]]
  $region22: #{tpu_custom_call.1} parent=0
    _
  %s6 = ssub.s32 1, %s4
  %s7 = scalar_select 0, %s6, %s4
  // Predicated region
  $region2: #{tpu_custom_call.1} parent=0 // pred_check
    _
  $region3: #{tpu_custom_call.1} parent=0 // pred_check_branch
    %9 = sbr.rel (0) target = $region5
  $region4: #{tpu_custom_call.1} parent=0 // pred_region
    _
  $region5: #{tpu_custom_call.1} parent=0 // pred_fallthru
    _
  // Predicated region
  $region6: #{tpu_custom_call.1} parent=0 // pred_check
    _
  $region7: #{tpu_custom_call.1} parent=0 // pred_check_branch
    %11 = sbr.rel (0) target = $region9
  $region8: #{tpu_custom_call.1} parent=0 // pred_region
    _
  $region9: #{tpu_custom_call.1} parent=0 // pred_fallthru
    _
  // Predicated region
  $region10: #{tpu_custom_call.1} parent=0 // pred_check
    _
  $region11: #{tpu_custom_call.1} parent=0 // pred_check_branch
    %13 = sbr.rel (0) target = $region13
  $region12: #{tpu_custom_call.1} parent=0 // pred_region
    _
  $region13: #{tpu_custom_call.1} parent=0 // pred_fallthru
    _
  %v14 = vld [vmem:[%s0] sm:$0xff]
  %v15 = vld [vmem:[%s0 + $0x8] sm:$0xff]
  %v16 = vld [vmem:[%s0 + $0x10] sm:$0xff]
  %v17 = vld [vmem:[%s0 + $0x18] sm:$0xff]
  %v18 = vld [vmem:[%s0 + $0x20] sm:$0xff]
  %v19 = vld [vmem:[%s0 + $0x28] sm:$0xff]
  %v20 = vld [vmem:[%s0 + $0x30] sm:$0xff]
  %v21 = vld [vmem:[%s0 + $0x38] sm:$0xff]
  %v22 = vld [vmem:[%s0 + $0x40] sm:$0xff]
  %v23 = vld [vmem:[%s0 + $0x48] sm:$0xff]
  %v24 = vld [vmem:[%s0 + $0x50] sm:$0xff]
  %v25 = vld [vmem:[%s0 + $0x58] sm:$0xff]
  %v26 = vld [vmem:[%s0 + $0x60] sm:$0xff]
  %v27 = vld [vmem:[%s0 + $0x68] sm:$0xff]
  %v28 = vld [vmem:[%s0 + $0x70] sm:$0xff]
  %v29 = vld [vmem:[%s0 + $0x78] sm:$0xff]
  %v30 = vld [vmem:[%s0 + $0x80] sm:$0xff]
  %v31 = vld [vmem:[%s0 + $0x88] sm:$0xff]
  %v32 = vld [vmem:[%s0 + $0x90] sm:$0xff]
  %v33 = vld [vmem:[%s0 + $0x98] sm:$0xff]
  %v34 = vld [vmem:[%s0 + $0xa0] sm:$0xff]
  %v35 = vld [vmem:[%s0 + $0xa8] sm:$0xff]
  %v36 = vld [vmem:[%s0 + $0xb0] sm:$0xff]
  %v37 = vld [vmem:[%s0 + $0xb8] sm:$0xff]
  %v38 = vld [vmem:[%s1] sm:$0xff]
  %v39 = vld [vmem:[%s1 + $0x8] sm:$0xff]
  %v40 = vld [vmem:[%s1 + $0x10] sm:$0xff]
  %v41 = vld [vmem:[%s1 + $0x18] sm:$0xff]
  %v42 = vld [vmem:[%s1 + $0x20] sm:$0xff]
  %v43 = vld [vmem:[%s1 + $0x28] sm:$0xff]
  %v44 = vld [vmem:[%s1 + $0x30] sm:$0xff]
  %v45 = vld [vmem:[%s1 + $0x38] sm:$0xff]
  %v46 = vld [vmem:[%s1 + $0x40] sm:$0xff]
  %v47 = vld [vmem:[%s1 + $0x48] sm:$0xff]
  %v48 = vld [vmem:[%s1 + $0x50] sm:$0xff]
  %v49 = vld [vmem:[%s1 + $0x58] sm:$0xff]
  %v50 = vld [vmem:[%s1 + $0x60] sm:$0xff]
  %v51 = vld [vmem:[%s1 + $0x68] sm:$0xff]
  %v52 = vld [vmem:[%s1 + $0x70] sm:$0xff]
  %v53 = vld [vmem:[%s1 + $0x78] sm:$0xff]
  %v54 = vld [vmem:[%s1 + $0x80] sm:$0xff]
  %v55 = vld [vmem:[%s1 + $0x88] sm:$0xff]
  %v56 = vld [vmem:[%s1 + $0x90] sm:$0xff]
  %v57 = vld [vmem:[%s1 + $0x98] sm:$0xff]
  %v58 = vld [vmem:[%s1 + $0xa0] sm:$0xff]
  %v59 = vld [vmem:[%s1 + $0xa8] sm:$0xff]
  %v60 = vld [vmem:[%s1 + $0xb0] sm:$0xff]
  %v61 = vld [vmem:[%s1 + $0xb8] sm:$0xff]
  %v62 = vadd.f32 %v14, %v38
  %v63 = vadd.f32 %v15, %v39
  %v64 = vadd.f32 %v16, %v40
  %v65 = vadd.f32 %v17, %v41
  %v66 = vadd.f32 %v18, %v42
  %v67 = vadd.f32 %v19, %v43
  %v68 = vadd.f32 %v20, %v44
  %v69 = vadd.f32 %v21, %v45
  %v70 = vadd.f32 %v22, %v46
  %v71 = vadd.f32 %v23, %v47
  %v72 = vadd.f32 %v24, %v48
  %v73 = vadd.f32 %v25, %v49
  %v74 = vadd.f32 %v26, %v50
  %v75 = vadd.f32 %v27, %v51
  %v76 = vadd.f32 %v28, %v52
  %v77 = vadd.f32 %v29, %v53
  %v78 = vadd.f32 %v30, %v54
  %v79 = vadd.f32 %v31, %v55
  %v80 = vadd.f32 %v32, %v56
  %v81 = vadd.f32 %v33, %v57
  %v82 = vadd.f32 %v34, %v58
  %v83 = vadd.f32 %v35, %v59
  %v84 = vadd.f32 %v36, %v60
  %v85 = vadd.f32 %v37, %v61
  %v86 = vld [vmem:[%s2] sm:$0xff]
  %v87 = vld [vmem:[%s2 + $0x8] sm:$0xff]
  %v88 = vld [vmem:[%s2 + $0x10] sm:$0xff]
  %v89 = vld [vmem:[%s2 + $0x18] sm:$0xff]
  %v90 = vld [vmem:[%s2 + $0x20] sm:$0xff]
  %v91 = vld [vmem:[%s2 + $0x28] sm:$0xff]
  %v92 = vld [vmem:[%s2 + $0x30] sm:$0xff]
  %v93 = vld [vmem:[%s2 + $0x38] sm:$0xff]
  %v94 = vld [vmem:[%s2 + $0x40] sm:$0xff]
  %v95 = vld [vmem:[%s2 + $0x48] sm:$0xff]
  %v96 = vld [vmem:[%s2 + $0x50] sm:$0xff]
  %v97 = vld [vmem:[%s2 + $0x58] sm:$0xff]
  %v98 = vld [vmem:[%s2 + $0x60] sm:$0xff]
  %v99 = vld [vmem:[%s2 + $0x68] sm:$0xff]
  %v100 = vld [vmem:[%s2 + $0x70] sm:$0xff]
  %v101 = vld [vmem:[%s2 + $0x78] sm:$0xff]
  %v102 = vld [vmem:[%s2 + $0x80] sm:$0xff]
  %v103 = vld [vmem:[%s2 + $0x88] sm:$0xff]
  %v104 = vld [vmem:[%s2 + $0x90] sm:$0xff]
  %v105 = vld [vmem:[%s2 + $0x98] sm:$0xff]
  %v106 = vld [vmem:[%s2 + $0xa0] sm:$0xff]
  %v107 = vld [vmem:[%s2 + $0xa8] sm:$0xff]
  %v108 = vld [vmem:[%s2 + $0xb0] sm:$0xff]
  %v109 = vld [vmem:[%s2 + $0xb8] sm:$0xff]
  %v110 = vld [vmem:[%s2 + $0xc0] sm:$0xff]
  %v111 = vld [vmem:[%s2 + $0xc8] sm:$0xff]
  %v112 = vld [vmem:[%s2 + $0xd0] sm:$0xff]
  %v113 = vld [vmem:[%s2 + $0xd8] sm:$0xff]
  %v114 = vld [vmem:[%s2 + $0xe0] sm:$0xff]
  %v115 = vld [vmem:[%s2 + $0xe8] sm:$0xff]
  %v116 = vld [vmem:[%s2 + $0xf0] sm:$0xff]
  %v117 = vld [vmem:[%s2 + $0xf8] sm:$0xff]
  %v118 = vld [vmem:[%s2 + $0x100] sm:$0xff]
  %v119 = vld [vmem:[%s2 + $0x108] sm:$0xff]
  %v120 = vld [vmem:[%s2 + $0x110] sm:$0xff]
  %v121 = vld [vmem:[%s2 + $0x118] sm:$0xff]
  %v122 = vld [vmem:[%s2 + $0x120] sm:$0xff]
  %v123 = vld [vmem:[%s2 + $0x128] sm:$0xff]
  %v124 = vld [vmem:[%s2 + $0x130] sm:$0xff]
  %v125 = vld [vmem:[%s2 + $0x138] sm:$0xff]
  %v126 = vld [vmem:[%s2 + $0x140] sm:$0xff]
  %v127 = vld [vmem:[%s2 + $0x148] sm:$0xff]
  %v128 = vld [vmem:[%s2 + $0x150] sm:$0xff]
  %v129 = vld [vmem:[%s2 + $0x158] sm:$0xff]
  %v130 = vld [vmem:[%s2 + $0x160] sm:$0xff]
  %v131 = vld [vmem:[%s2 + $0x168] sm:$0xff]
  %v132 = vld [vmem:[%s2 + $0x170] sm:$0xff]
  %v133 = vld [vmem:[%s2 + $0x178] sm:$0xff]
  %v134 = vld [vmem:[%s2 + $0x180] sm:$0xff]
  %v135 = vld [vmem:[%s2 + $0x188] sm:$0xff]
  %v136 = vld [vmem:[%s2 + $0x190] sm:$0xff]
  %v137 = vld [vmem:[%s2 + $0x198] sm:$0xff]
  %v138 = vld [vmem:[%s2 + $0x1a0] sm:$0xff]
  %v139 = vld [vmem:[%s2 + $0x1a8] sm:$0xff]
  %v140 = vld [vmem:[%s2 + $0x1b0] sm:$0xff]
  %v141 = vld [vmem:[%s2 + $0x1b8] sm:$0xff]
  %v142 = vld [vmem:[%s2 + $0x1c0] sm:$0xff]
  %v143 = vld [vmem:[%s2 + $0x1c8] sm:$0xff]
  %v144 = vld [vmem:[%s2 + $0x1d0] sm:$0xff]
  %v145 = vld [vmem:[%s2 + $0x1d8] sm:$0xff]
  %v146 = vld [vmem:[%s2 + $0x1e0] sm:$0xff]
  %v147 = vld [vmem:[%s2 + $0x1e8] sm:$0xff]
  %v148 = vld [vmem:[%s2 + $0x1f0] sm:$0xff]
  %v149 = vld [vmem:[%s2 + $0x1f8] sm:$0xff]
  %v150 = vld [vmem:[%s2 + $0x200] sm:$0xff]
  %v151 = vld [vmem:[%s2 + $0x208] sm:$0xff]
  %v152 = vld [vmem:[%s2 + $0x210] sm:$0xff]
  %v153 = vld [vmem:[%s2 + $0x218] sm:$0xff]
  %v154 = vld [vmem:[%s2 + $0x220] sm:$0xff]
  %v155 = vld [vmem:[%s2 + $0x228] sm:$0xff]
  %v156 = vld [vmem:[%s2 + $0x230] sm:$0xff]
  %v157 = vld [vmem:[%s2 + $0x238] sm:$0xff]
  %vm158 = vcmask 785408
  %v160 = vsel %vm158, %v86, 0
  %v163 = vsel %vm158, %v87, 0
  %v166 = vsel %vm158, %v88, 0
  %v169 = vsel %vm158, %v89, 0
  %v172 = vsel %vm158, %v90, 0
  %v175 = vsel %vm158, %v91, 0
  %v178 = vsel %vm158, %v92, 0
  %v181 = vsel %vm158, %v93, 0
  %v184 = vsel %vm158, %v94, 0
  %v187 = vsel %vm158, %v95, 0
  %v190 = vsel %vm158, %v96, 0
  %v193 = vsel %vm158, %v97, 0
  %v196 = vsel %vm158, %v98, 0
  %v199 = vsel %vm158, %v99, 0
  %v202 = vsel %vm158, %v100, 0
  %v205 = vsel %vm158, %v101, 0
  %v208 = vsel %vm158, %v102, 0
  %v211 = vsel %vm158, %v103, 0
  %v214 = vsel %vm158, %v104, 0
  %v217 = vsel %vm158, %v105, 0
  %v220 = vsel %vm158, %v106, 0
  %v223 = vsel %vm158, %v107, 0
  %v226 = vsel %vm158, %v108, 0
  %v229 = vsel %vm158, %v109, 0
  %v232 = vsel %vm158, %v110, 0
  %v235 = vsel %vm158, %v111, 0
  %v238 = vsel %vm158, %v112, 0
  %v241 = vsel %vm158, %v113, 0
  %v244 = vsel %vm158, %v114, 0
  %v247 = vsel %vm158, %v115, 0
  %v250 = vsel %vm158, %v116, 0
  %v253 = vsel %vm158, %v117, 0
  %v256 = vsel %vm158, %v118, 0
  %v259 = vsel %vm158, %v119, 0
  %v262 = vsel %vm158, %v120, 0
  %v265 = vsel %vm158, %v121, 0
  %v268 = vsel %vm158, %v122, 0
  %v271 = vsel %vm158, %v123, 0
  %v274 = vsel %vm158, %v124, 0
  %v277 = vsel %vm158, %v125, 0
  %v280 = vsel %vm158, %v126, 0
  %v283 = vsel %vm158, %v127, 0
  %v286 = vsel %vm158, %v128, 0
  %v289 = vsel %vm158, %v129, 0
  %v292 = vsel %vm158, %v130, 0
  %v295 = vsel %vm158, %v131, 0
  %v298 = vsel %vm158, %v132, 0
  %v301 = vsel %vm158, %v133, 0
  %v304 = vsel %vm158, %v134, 0
  %v307 = vsel %vm158, %v135, 0
  %v310 = vsel %vm158, %v136, 0
  %v313 = vsel %vm158, %v137, 0
  %v316 = vsel %vm158, %v138, 0
  %v319 = vsel %vm158, %v139, 0
  %v322 = vsel %vm158, %v140, 0
  %v325 = vsel %vm158, %v141, 0
  %v328 = vsel %vm158, %v142, 0
  %v331 = vsel %vm158, %v143, 0
  %v334 = vsel %vm158, %v144, 0
  %v337 = vsel %vm158, %v145, 0
  %v340 = vsel %vm158, %v146, 0
  %v343 = vsel %vm158, %v147, 0
  %v346 = vsel %vm158, %v148, 0
  %v349 = vsel %vm158, %v149, 0
  %v352 = vsel %vm158, %v150, 0
  %v355 = vsel %vm158, %v151, 0
  %v358 = vsel %vm158, %v152, 0
  %v361 = vsel %vm158, %v153, 0
  %v364 = vsel %vm158, %v154, 0
  %v367 = vsel %vm158, %v155, 0
  %v370 = vsel %vm158, %v156, 0
  %v373 = vsel %vm158, %v157, 0
  %375 = vmatprep.subr.mxu0 %v63
  %376 = vmatpush1.msra.mxu0 %v62
  %377 = vmatprep.subr.mxu0 %v65
  %378 = vmatpush1.msra.mxu0 %v64
  %379 = vmatprep.subr.mxu0 %v67
  %380 = vmatpush1.msra.mxu0 %v66
  %381 = vmatprep.subr.mxu0 %v69
  %382 = vmatpush1.msra.mxu0 %v68
  %383 = vmatprep.subr.mxu0 %v71
  %384 = vmatpush1.msra.mxu0 %v70
  %385 = vmatprep.subr.mxu0 %v73
  %386 = vmatpush1.msra.mxu0 %v72
  %387 = vmatprep.subr.mxu0 %v75
  %388 = vmatpush1.msra.mxu0 %v74
  %389 = vmatprep.subr.mxu0 %v77
  %390 = vmatpush1.msra.mxu0 %v76
  %391 = vmatprep.subr.mxu0 %v79
  %392 = vmatpush1.msra.mxu0 %v78
  %393 = vmatprep.subr.mxu0 %v81
  %394 = vmatpush1.msra.mxu0 %v80
  %395 = vmatprep.subr.mxu0 %v83
  %396 = vmatpush1.msra.mxu0 %v82
  %397 = vmatprep.subr.mxu0 %v85
  %398 = vmatpush1.msra.mxu0 %v84
  %399 = vmatprep.subr.mxu0 0.0
  %400 = vmatpush1.msra.mxu0 0.0
  %401 = vmatprep.subr.mxu0 0.0
  %402 = vmatpush1.msra.mxu0 0.0
  %403 = vmatprep.subr.mxu0 0.0
  %404 = vmatpush1.msra.mxu0 0.0
  %405 = vmatprep.subr.mxu0 0.0
  %406 = vmatpush1.msra.mxu0 0.0
  %407 = vmatprep.subr.mxu0 0.0
  %408 = vmatpush1.msra.mxu0 0.0
  %409 = vmatprep.subr.mxu0 0.0
  %410 = vmatpush1.msra.mxu0 0.0
  %411 = vmatprep.subr.mxu0 0.0
  %412 = vmatpush1.msra.mxu0 0.0
  %413 = vmatprep.subr.mxu0 0.0
  %414 = vmatpush1.msra.mxu0 0.0
  %415 = vmatprep.subr.mxu0 0.0
  %416 = vmatpush1.msra.mxu0 0.0
  %417 = vmatprep.subr.mxu0 0.0
  %418 = vmatpush1.msra.mxu0 0.0
  %419 = vmatprep.subr.mxu0 0.0
  %420 = vmatpush1.msra.mxu0 0.0
  %421 = vmatprep.subr.mxu0 0.0
  %422 = vmatpush1.msra.mxu0 0.0
  %423 = vmatprep.subr.mxu0 0.0
  %424 = vmatpush1.msra.mxu0 0.0
  %425 = vmatprep.subr.mxu0 0.0
  %426 = vmatpush1.msra.mxu0 0.0
  %427 = vmatprep.subr.mxu0 0.0
  %428 = vmatpush1.msra.mxu0 0.0
  %429 = vmatprep.subr.mxu0 0.0
  %430 = vmatpush1.msra.mxu0 0.0
  %431 = vmatprep.subr.mxu0 0.0
  %432 = vmatpush1.msra.mxu0 0.0
  %433 = vmatprep.subr.mxu0 0.0
  %434 = vmatpush1.msra.mxu0 0.0
  %435 = vmatprep.subr.mxu0 0.0
  %436 = vmatpush1.msra.mxu0 0.0
  %437 = vmatprep.subr.mxu0 0.0
  %438 = vmatpush1.msra.mxu0 0.0
  %439 = vmatprep.mubr.f32.mxu0 0.0
  %440 = vmatmul.mubr.f32.gmra.mrb[0].mxu0 %v160
  %v441 = vpop.f32.mrb[0].mxu0
  %v442 = vadd.f32 0.0, %v441
  %v443 = vpop.f32.mrb[0].mxu0
  %v444 = vadd.f32 0.0, %v443
  %445 = vmatprep.mubr.f32.mxu0 0.0
  %446 = vmatmul.mubr.f32.gmra.mrb[0].mxu0 %v163
  %v447 = vpop.f32.mrb[0].mxu0
  %v448 = vadd.f32 0.0, %v447
  %v449 = vpop.f32.mrb[0].mxu0
  %v450 = vadd.f32 0.0, %v449
  %451 = vmatprep.mubr.f32.mxu0 0.0
  %452 = vmatmul.mubr.f32.gmra.mrb[0].mxu0 %v166
  %v453 = vpop.f32.mrb[0].mxu0
  %v454 = vadd.f32 0.0, %v453
  %v455 = vpop.f32.mrb[0].mxu0
  %v456 = vadd.f32 0.0, %v455
  %457 = vmatprep.mubr.f32.mxu0 0.0
  %458 = vmatmul.mubr.f32.gmra.mrb[0].mxu0 %v169
  %v459 = vpop.f32.mrb[0].mxu0
  %v460 = vadd.f32 0.0, %v459
  %v461 = vpop.f32.mrb[0].mxu0
  %v462 = vadd.f32 0.0, %v461
  %463 = vmatprep.mubr.f32.mxu0 0.0
  %464 = vmatmul.mubr.f32.gmra.mrb[0].mxu0 %v172
  %v465 = vpop.f32.mrb[0].mxu0
  %v466 = vadd.f32 0.0, %v465
  %v467 = vpop.f32.mrb[0].mxu0
  %v468 = vadd.f32 0.0, %v467
  %469 = vmatprep.mubr.f32.mxu0 0.0
  %470 = vmatmul.mubr.f32.gmra.mrb[0].mxu0 %v175
  %v471 = vpop.f32.mrb[0].mxu0
  %v472 = vadd.f32 0.0, %v471
  %v473 = vpop.f32.mrb[0].mxu0
  %v474 = vadd.f32 0.0, %v473
  %475 = vmatprep.mubr.f32.mxu0 0.0
  %476 = vmatmul.mubr.f32.gmra.mrb[0].mxu0 %v178
  %v477 = vpop.f32.mrb[0].mxu0
  %v478 = vadd.f32 0.0, %v477
  %v479 = vpop.f32.mrb[0].mxu0
  %v480 = vadd.f32 0.0, %v479
  %481 = vmatprep.mubr.f32.mxu0 0.0
  %482 = vmatmul.mubr.f32.gmra.mrb[0].mxu0 %v181
  %v483 = vpop.f32.mrb[0].mxu0
  %v484 = vadd.f32 0.0, %v483
  %v485 = vpop.f32.mrb[0].mxu0
  %v486 = vadd.f32 0.0, %v485
  %487 = vmatprep.mubr.f32.mxu0 0.0
  %488 = vmatmul.mubr.f32.gmra.mrb[0].mxu0 %v184
  %v489 = vpop.f32.mrb[0].mxu0
  %v490 = vadd.f32 0.0, %v489
  %v491 = vpop.f32.mrb[0].mxu0
  %v492 = vadd.f32 0.0, %v491
  %493 = vmatprep.mubr.f32.mxu0 0.0
  %494 = vmatmul.mubr.f32.gmra.mrb[0].mxu0 %v187
  %v495 = vpop.f32.mrb[0].mxu0
  %v496 = vadd.f32 0.0, %v495
  %v497 = vpop.f32.mrb[0].mxu0
  %v498 = vadd.f32 0.0, %v497
  %499 = vmatprep.mubr.f32.mxu0 0.0
  %500 = vmatmul.mubr.f32.gmra.mrb[0].mxu0 %v190
  %v501 = vpop.f32.mrb[0].mxu0
  %v502 = vadd.f32 0.0, %v501
  %v503 = vpop.f32.mrb[0].mxu0
  %v504 = vadd.f32 0.0, %v503
  %505 = vmatprep.mubr.f32.mxu0 0.0
  %506 = vmatmul.mubr.f32.gmra.mrb[0].mxu0 %v193
  %v507 = vpop.f32.mrb[0].mxu0
  %v508 = vadd.f32 0.0, %v507
  %v509 = vpop.f32.mrb[0].mxu0
  %v510 = vadd.f32 0.0, %v509
  %511 = vmatprep.mubr.f32.mxu0 0.0
  %512 = vmatmul.mubr.f32.gmra.mrb[0].mxu0 %v196
  %v513 = vpop.f32.mrb[0].mxu0
  %v514 = vadd.f32 0.0, %v513
  %v515 = vpop.f32.mrb[0].mxu0
  %v516 = vadd.f32 0.0, %v515
  %517 = vmatprep.mubr.f32.mxu0 0.0
  %518 = vmatmul.mubr.f32.gmra.mrb[0].mxu0 %v199
  %v519 = vpop.f32.mrb[0].mxu0
  %v520 = vadd.f32 0.0, %v519
  %v521 = vpop.f32.mrb[0].mxu0
  %v522 = vadd.f32 0.0, %v521
  %523 = vmatprep.mubr.f32.mxu0 0.0
  %524 = vmatmul.mubr.f32.gmra.mrb[0].mxu0 %v202
  %v525 = vpop.f32.mrb[0].mxu0
  %v526 = vadd.f32 0.0, %v525
  %v527 = vpop.f32.mrb[0].mxu0
  %v528 = vadd.f32 0.0, %v527
  %529 = vmatprep.mubr.f32.mxu0 0.0
  %530 = vmatmul.mubr.f32.gmra.mrb[0].mxu0 %v205
  %v531 = vpop.f32.mrb[0].mxu0
  %v532 = vadd.f32 0.0, %v531
  %v533 = vpop.f32.mrb[0].mxu0
  %v534 = vadd.f32 0.0, %v533
  %535 = vmatprep.mubr.f32.mxu0 0.0
  %536 = vmatmul.mubr.f32.gmra.mrb[0].mxu0 %v208
  %v537 = vpop.f32.mrb[0].mxu0
  %v538 = vadd.f32 0.0, %v537
  %v539 = vpop.f32.mrb[0].mxu0
  %v540 = vadd.f32 0.0, %v539
  %541 = vmatprep.mubr.f32.mxu0 0.0
  %542 = vmatmul.mubr.f32.gmra.mrb[0].mxu0 %v211
  %v543 = vpop.f32.mrb[0].mxu0
  %v544 = vadd.f32 0.0, %v543
  %v545 = vpop.f32.mrb[0].mxu0
  %v546 = vadd.f32 0.0, %v545
  %547 = vmatprep.mubr.f32.mxu0 0.0
  %548 = vmatmul.mubr.f32.gmra.mrb[0].mxu0 %v214
  %v549 = vpop.f32.mrb[0].mxu0
  %v550 = vadd.f32 0.0, %v549
  %v551 = vpop.f32.mrb[0].mxu0
  %v552 = vadd.f32 0.0, %v551
  %553 = vmatprep.mubr.f32.mxu0 0.0
  %554 = vmatmul.mubr.f32.gmra.mrb[0].mxu0 %v217
  %v555 = vpop.f32.mrb[0].mxu0
  %v556 = vadd.f32 0.0, %v555
  %v557 = vpop.f32.mrb[0].mxu0
  %v558 = vadd.f32 0.0, %v557
  %559 = vmatprep.mubr.f32.mxu0 0.0
  %560 = vmatmul.mubr.f32.gmra.mrb[0].mxu0 %v220
  %v561 = vpop.f32.mrb[0].mxu0
  %v562 = vadd.f32 0.0, %v561
  %v563 = vpop.f32.mrb[0].mxu0
  %v564 = vadd.f32 0.0, %v563
  %565 = vmatprep.mubr.f32.mxu0 0.0
  %566 = vmatmul.mubr.f32.gmra.mrb[0].mxu0 %v223
  %v567 = vpop.f32.mrb[0].mxu0
  %v568 = vadd.f32 0.0, %v567
  %v569 = vpop.f32.mrb[0].mxu0
  %v570 = vadd.f32 0.0, %v569
  %571 = vmatprep.mubr.f32.mxu0 0.0
  %572 = vmatmul.mubr.f32.gmra.mrb[0].mxu0 %v226
  %v573 = vpop.f32.mrb[0].mxu0
  %v574 = vadd.f32 0.0, %v573
  %v575 = vpop.f32.mrb[0].mxu0
  %v576 = vadd.f32 0.0, %v575
  %577 = vmatprep.mubr.f32.mxu0 0.0
  %578 = vmatmul.mubr.f32.gmra.mrb[0].mxu0 %v229
  %v579 = vpop.f32.mrb[0].mxu0
  %v580 = vadd.f32 0.0, %v579
  %v581 = vpop.f32.mrb[0].mxu0
  %v582 = vadd.f32 0.0, %v581
  %583 = vmatprep.mubr.f32.mxu0 0.0
  %584 = vmatmul.mubr.f32.gmra.mrb[0].mxu0 %v232
  %v585 = vpop.f32.mrb[0].mxu0
  %v586 = vadd.f32 0.0, %v585
  %v587 = vpop.f32.mrb[0].mxu0
  %v588 = vadd.f32 0.0, %v587
  %589 = vmatprep.mubr.f32.mxu0 0.0
  %590 = vmatmul.mubr.f32.gmra.mrb[0].mxu0 %v235
  %v591 = vpop.f32.mrb[0].mxu0
  %v592 = vadd.f32 0.0, %v591
  %v593 = vpop.f32.mrb[0].mxu0
  %v594 = vadd.f32 0.0, %v593
  %595 = vmatprep.mubr.f32.mxu0 0.0
  %596 = vmatmul.mubr.f32.gmra.mrb[0].mxu0 %v238
  %v597 = vpop.f32.mrb[0].mxu0
  %v598 = vadd.f32 0.0, %v597
  %v599 = vpop.f32.mrb[0].mxu0
  %v600 = vadd.f32 0.0, %v599
  %601 = vmatprep.mubr.f32.mxu0 0.0
  %602 = vmatmul.mubr.f32.gmra.mrb[0].mxu0 %v241
  %v603 = vpop.f32.mrb[0].mxu0
  %v604 = vadd.f32 0.0, %v603
  %v605 = vpop.f32.mrb[0].mxu0
  %v606 = vadd.f32 0.0, %v605
  %607 = vmatprep.mubr.f32.mxu0 0.0
  %608 = vmatmul.mubr.f32.gmra.mrb[0].mxu0 %v244
  %v609 = vpop.f32.mrb[0].mxu0
  %v610 = vadd.f32 0.0, %v609
  %v611 = vpop.f32.mrb[0].mxu0
  %v612 = vadd.f32 0.0, %v611
  %613 = vmatprep.mubr.f32.mxu0 0.0
  %614 = vmatmul.mubr.f32.gmra.mrb[0].mxu0 %v247
  %v615 = vpop.f32.mrb[0].mxu0
  %v616 = vadd.f32 0.0, %v615
  %v617 = vpop.f32.mrb[0].mxu0
  %v618 = vadd.f32 0.0, %v617
  %619 = vmatprep.mubr.f32.mxu0 0.0
  %620 = vmatmul.mubr.f32.gmra.mrb[0].mxu0 %v250
  %v621 = vpop.f32.mrb[0].mxu0
  %v622 = vadd.f32 0.0, %v621
  %v623 = vpop.f32.mrb[0].mxu0
  %v624 = vadd.f32 0.0, %v623
  %625 = vmatprep.mubr.f32.mxu0 0.0
  %626 = vmatmul.mubr.f32.gmra.mrb[0].mxu0 %v253
  %v627 = vpop.f32.mrb[0].mxu0
  %v628 = vadd.f32 0.0, %v627
  %v629 = vpop.f32.mrb[0].mxu0
  %v630 = vadd.f32 0.0, %v629
  %631 = vmatprep.mubr.f32.mxu0 0.0
  %632 = vmatmul.mubr.f32.gmra.mrb[0].mxu0 %v256
  %v633 = vpop.f32.mrb[0].mxu0
  %v634 = vadd.f32 0.0, %v633
  %v635 = vpop.f32.mrb[0].mxu0
  %v636 = vadd.f32 0.0, %v635
  %637 = vmatprep.mubr.f32.mxu0 0.0
  %638 = vmatmul.mubr.f32.gmra.mrb[0].mxu0 %v259
  %v639 = vpop.f32.mrb[0].mxu0
  %v640 = vadd.f32 0.0, %v639
  %v641 = vpop.f32.mrb[0].mxu0
  %v642 = vadd.f32 0.0, %v641
  %643 = vmatprep.mubr.f32.mxu0 0.0
  %644 = vmatmul.mubr.f32.gmra.mrb[0].mxu0 %v262
  %v645 = vpop.f32.mrb[0].mxu0
  %v646 = vadd.f32 0.0, %v645
  %v647 = vpop.f32.mrb[0].mxu0
  %v648 = vadd.f32 0.0, %v647
  %649 = vmatprep.mubr.f32.mxu0 0.0
  %650 = vmatmul.mubr.f32.gmra.mrb[0].mxu0 %v265
  %v651 = vpop.f32.mrb[0].mxu0
  %v652 = vadd.f32 0.0, %v651
  %v653 = vpop.f32.mrb[0].mxu0
  %v654 = vadd.f32 0.0, %v653
  %655 = vmatprep.mubr.f32.mxu0 0.0
  %656 = vmatmul.mubr.f32.gmra.mrb[0].mxu0 %v268
  %v657 = vpop.f32.mrb[0].mxu0
  %v658 = vadd.f32 0.0, %v657
  %v659 = vpop.f32.mrb[0].mxu0
  %v660 = vadd.f32 0.0, %v659
  %661 = vmatprep.mubr.f32.mxu0 0.0
  %662 = vmatmul.mubr.f32.gmra.mrb[0].mxu0 %v271
  %v663 = vpop.f32.mrb[0].mxu0
  %v664 = vadd.f32 0.0, %v663
  %v665 = vpop.f32.mrb[0].mxu0
  %v666 = vadd.f32 0.0, %v665
  %667 = vmatprep.mubr.f32.mxu0 0.0
  %668 = vmatmul.mubr.f32.gmra.mrb[0].mxu0 %v274
  %v669 = vpop.f32.mrb[0].mxu0
  %v670 = vadd.f32 0.0, %v669
  %v671 = vpop.f32.mrb[0].mxu0
  %v672 = vadd.f32 0.0, %v671
  %673 = vmatprep.mubr.f32.mxu0 0.0
  %674 = vmatmul.mubr.f32.gmra.mrb[0].mxu0 %v277
  %v675 = vpop.f32.mrb[0].mxu0
  %v676 = vadd.f32 0.0, %v675
  %v677 = vpop.f32.mrb[0].mxu0
  %v678 = vadd.f32 0.0, %v677
  %679 = vmatprep.mubr.f32.mxu0 0.0
  %680 = vmatmul.mubr.f32.gmra.mrb[0].mxu0 %v280
  %v681 = vpop.f32.mrb[0].mxu0
  %v682 = vadd.f32 0.0, %v681
  %v683 = vpop.f32.mrb[0].mxu0
  %v684 = vadd.f32 0.0, %v683
  %685 = vmatprep.mubr.f32.mxu0 0.0
  %686 = vmatmul.mubr.f32.gmra.mrb[0].mxu0 %v283
  %v687 = vpop.f32.mrb[0].mxu0
  %v688 = vadd.f32 0.0, %v687
  %v689 = vpop.f32.mrb[0].mxu0
  %v690 = vadd.f32 0.0, %v689
  %691 = vmatprep.mubr.f32.mxu0 0.0
  %692 = vmatmul.mubr.f32.gmra.mrb[0].mxu0 %v286
  %v693 = vpop.f32.mrb[0].mxu0
  %v694 = vadd.f32 0.0, %v693
  %v695 = vpop.f32.mrb[0].mxu0
  %v696 = vadd.f32 0.0, %v695
  %697 = vmatprep.mubr.f32.mxu0 0.0
  %698 = vmatmul.mubr.f32.gmra.mrb[0].mxu0 %v289
  %v699 = vpop.f32.mrb[0].mxu0
  %v700 = vadd.f32 0.0, %v699
  %v701 = vpop.f32.mrb[0].mxu0
  %v702 = vadd.f32 0.0, %v701
  %703 = vmatprep.mubr.f32.mxu0 0.0
  %704 = vmatmul.mubr.f32.gmra.mrb[0].mxu0 %v292
  %v705 = vpop.f32.mrb[0].mxu0
  %v706 = vadd.f32 0.0, %v705
  %v707 = vpop.f32.mrb[0].mxu0
  %v708 = vadd.f32 0.0, %v707
  %709 = vmatprep.mubr.f32.mxu0 0.0
  %710 = vmatmul.mubr.f32.gmra.mrb[0].mxu0 %v295
  %v711 = vpop.f32.mrb[0].mxu0
  %v712 = vadd.f32 0.0, %v711
  %v713 = vpop.f32.mrb[0].mxu0
  %v714 = vadd.f32 0.0, %v713
  %715 = vmatprep.mubr.f32.mxu0 0.0
  %716 = vmatmul.mubr.f32.gmra.mrb[0].mxu0 %v298
  %v717 = vpop.f32.mrb[0].mxu0
  %v718 = vadd.f32 0.0, %v717
  %v719 = vpop.f32.mrb[0].mxu0
  %v720 = vadd.f32 0.0, %v719
  %721 = vmatprep.mubr.f32.mxu0 0.0
  %722 = vmatmul.mubr.f32.gmra.mrb[0].mxu0 %v301
  %v723 = vpop.f32.mrb[0].mxu0
  %v724 = vadd.f32 0.0, %v723
  %v725 = vpop.f32.mrb[0].mxu0
  %v726 = vadd.f32 0.0, %v725
  %727 = vmatprep.mubr.f32.mxu0 0.0
  %728 = vmatmul.mubr.f32.gmra.mrb[0].mxu0 %v304
  %v729 = vpop.f32.mrb[0].mxu0
  %v730 = vadd.f32 0.0, %v729
  %v731 = vpop.f32.mrb[0].mxu0
  %v732 = vadd.f32 0.0, %v731
  %733 = vmatprep.mubr.f32.mxu0 0.0
  %734 = vmatmul.mubr.f32.gmra.mrb[0].mxu0 %v307
  %v735 = vpop.f32.mrb[0].mxu0
  %v736 = vadd.f32 0.0, %v735
  %v737 = vpop.f32.mrb[0].mxu0
  %v738 = vadd.f32 0.0, %v737
  %739 = vmatprep.mubr.f32.mxu0 0.0
  %740 = vmatmul.mubr.f32.gmra.mrb[0].mxu0 %v310
  %v741 = vpop.f32.mrb[0].mxu0
  %v742 = vadd.f32 0.0, %v741
  %v743 = vpop.f32.mrb[0].mxu0
  %v744 = vadd.f32 0.0, %v743
  %745 = vmatprep.mubr.f32.mxu0 0.0
  %746 = vmatmul.mubr.f32.gmra.mrb[0].mxu0 %v313
  %v747 = vpop.f32.mrb[0].mxu0
  %v748 = vadd.f32 0.0, %v747
  %v749 = vpop.f32.mrb[0].mxu0
  %v750 = vadd.f32 0.0, %v749
  %751 = vmatprep.mubr.f32.mxu0 0.0
  %752 = vmatmul.mubr.f32.gmra.mrb[0].mxu0 %v316
  %v753 = vpop.f32.mrb[0].mxu0
  %v754 = vadd.f32 0.0, %v753
  %v755 = vpop.f32.mrb[0].mxu0
  %v756 = vadd.f32 0.0, %v755
  %757 = vmatprep.mubr.f32.mxu0 0.0
  %758 = vmatmul.mubr.f32.gmra.mrb[0].mxu0 %v319
  %v759 = vpop.f32.mrb[0].mxu0
  %v760 = vadd.f32 0.0, %v759
  %v761 = vpop.f32.mrb[0].mxu0
  %v762 = vadd.f32 0.0, %v761
  %763 = vmatprep.mubr.f32.mxu0 0.0
  %764 = vmatmul.mubr.f32.gmra.mrb[0].mxu0 %v322
  %v765 = vpop.f32.mrb[0].mxu0
  %v766 = vadd.f32 0.0, %v765
  %v767 = vpop.f32.mrb[0].mxu0
  %v768 = vadd.f32 0.0, %v767
  %769 = vmatprep.mubr.f32.mxu0 0.0
  %770 = vmatmul.mubr.f32.gmra.mrb[0].mxu0 %v325
  %v771 = vpop.f32.mrb[0].mxu0
  %v772 = vadd.f32 0.0, %v771
  %v773 = vpop.f32.mrb[0].mxu0
  %v774 = vadd.f32 0.0, %v773
  %775 = vmatprep.mubr.f32.mxu0 0.0
  %776 = vmatmul.mubr.f32.gmra.mrb[0].mxu0 %v328
  %v777 = vpop.f32.mrb[0].mxu0
  %v778 = vadd.f32 0.0, %v777
  %v779 = vpop.f32.mrb[0].mxu0
  %v780 = vadd.f32 0.0, %v779
  %781 = vmatprep.mubr.f32.mxu0 0.0
  %782 = vmatmul.mubr.f32.gmra.mrb[0].mxu0 %v331
  %v783 = vpop.f32.mrb[0].mxu0
  %v784 = vadd.f32 0.0, %v783
  %v785 = vpop.f32.mrb[0].mxu0
  %v786 = vadd.f32 0.0, %v785
  %787 = vmatprep.mubr.f32.mxu0 0.0
  %788 = vmatmul.mubr.f32.gmra.mrb[0].mxu0 %v334
  %v789 = vpop.f32.mrb[0].mxu0
  %v790 = vadd.f32 0.0, %v789
  %v791 = vpop.f32.mrb[0].mxu0
  %v792 = vadd.f32 0.0, %v791
  %793 = vmatprep.mubr.f32.mxu0 0.0
  %794 = vmatmul.mubr.f32.gmra.mrb[0].mxu0 %v337
  %v795 = vpop.f32.mrb[0].mxu0
  %v796 = vadd.f32 0.0, %v795
  %v797 = vpop.f32.mrb[0].mxu0
  %v798 = vadd.f32 0.0, %v797
  %799 = vmatprep.mubr.f32.mxu0 0.0
  %800 = vmatmul.mubr.f32.gmra.mrb[0].mxu0 %v340
  %v801 = vpop.f32.mrb[0].mxu0
  %v802 = vadd.f32 0.0, %v801
  %v803 = vpop.f32.mrb[0].mxu0
  %v804 = vadd.f32 0.0, %v803
  %805 = vmatprep.mubr.f32.mxu0 0.0
  %806 = vmatmul.mubr.f32.gmra.mrb[0].mxu0 %v343
  %v807 = vpop.f32.mrb[0].mxu0
  %v808 = vadd.f32 0.0, %v807
  %v809 = vpop.f32.mrb[0].mxu0
  %v810 = vadd.f32 0.0, %v809
  %811 = vmatprep.mubr.f32.mxu0 0.0
  %812 = vmatmul.mubr.f32.gmra.mrb[0].mxu0 %v346
  %v813 = vpop.f32.mrb[0].mxu0
  %v814 = vadd.f32 0.0, %v813
  %v815 = vpop.f32.mrb[0].mxu0
  %v816 = vadd.f32 0.0, %v815
  %817 = vmatprep.mubr.f32.mxu0 0.0
  %818 = vmatmul.mubr.f32.gmra.mrb[0].mxu0 %v349
  %v819 = vpop.f32.mrb[0].mxu0
  %v820 = vadd.f32 0.0, %v819
  %v821 = vpop.f32.mrb[0].mxu0
  %v822 = vadd.f32 0.0, %v821
  %823 = vmatprep.mubr.f32.mxu0 0.0
  %824 = vmatmul.mubr.f32.gmra.mrb[0].mxu0 %v352
  %v825 = vpop.f32.mrb[0].mxu0
  %v826 = vadd.f32 0.0, %v825
  %v827 = vpop.f32.mrb[0].mxu0
  %v828 = vadd.f32 0.0, %v827
  %829 = vmatprep.mubr.f32.mxu0 0.0
  %830 = vmatmul.mubr.f32.gmra.mrb[0].mxu0 %v355
  %v831 = vpop.f32.mrb[0].mxu0
  %v832 = vadd.f32 0.0, %v831
  %v833 = vpop.f32.mrb[0].mxu0
  %v834 = vadd.f32 0.0, %v833
  %835 = vmatprep.mubr.f32.mxu0 0.0
  %836 = vmatmul.mubr.f32.gmra.mrb[0].mxu0 %v358
  %v837 = vpop.f32.mrb[0].mxu0
  %v838 = vadd.f32 0.0, %v837
  %v839 = vpop.f32.mrb[0].mxu0
  %v840 = vadd.f32 0.0, %v839
  %841 = vmatprep.mubr.f32.mxu0 0.0
  %842 = vmatmul.mubr.f32.gmra.mrb[0].mxu0 %v361
  %v843 = vpop.f32.mrb[0].mxu0
  %v844 = vadd.f32 0.0, %v843
  %v845 = vpop.f32.mrb[0].mxu0
  %v846 = vadd.f32 0.0, %v845
  %847 = vmatprep.mubr.f32.mxu0 0.0
  %848 = vmatmul.mubr.f32.gmra.mrb[0].mxu0 %v364
  %v849 = vpop.f32.mrb[0].mxu0
  %v850 = vadd.f32 0.0, %v849
  %v851 = vpop.f32.mrb[0].mxu0
  %v852 = vadd.f32 0.0, %v851
  %853 = vmatprep.mubr.f32.mxu0 0.0
  %854 = vmatmul.mubr.f32.gmra.mrb[0].mxu0 %v367
  %v855 = vpop.f32.mrb[0].mxu0
  %v856 = vadd.f32 0.0, %v855
  %v857 = vpop.f32.mrb[0].mxu0
  %v858 = vadd.f32 0.0, %v857
  %859 = vmatprep.mubr.f32.mxu0 0.0
  %860 = vmatmul.mubr.f32.gmra.mrb[0].mxu0 %v370
  %v861 = vpop.f32.mrb[0].mxu0
  %v862 = vadd.f32 0.0, %v861
  %v863 = vpop.f32.mrb[0].mxu0
  %v864 = vadd.f32 0.0, %v863
  %865 = vmatprep.mubr.f32.mxu0 0.0
  %866 = vmatmul.mubr.f32.gmra.mrb[0].mxu0 %v373
  %v867 = vpop.f32.mrb[0].mxu0
  %v868 = vadd.f32 0.0, %v867
  %v869 = vpop.f32.mrb[0].mxu0
  %v870 = vadd.f32 0.0, %v869
  %871 = vdwg.mxu0
  %872 = vst [vmem:[%s3] sm:$0xff] %v442
  %vm873 = vcmask 556032
  %874 = vst.msk [vmem:[%s3 + $0x8] sm:$0xff] %vm873, %v444
  %875 = vst [vmem:[%s3 + $0x10] sm:$0xff] %v448
  %876 = vst.msk [vmem:[%s3 + $0x18] sm:$0xff] %vm873, %v450
  %877 = vst [vmem:[%s3 + $0x20] sm:$0xff] %v454
  %878 = vst.msk [vmem:[%s3 + $0x28] sm:$0xff] %vm873, %v456
  %879 = vst [vmem:[%s3 + $0x30] sm:$0xff] %v460
  %880 = vst.msk [vmem:[%s3 + $0x38] sm:$0xff] %vm873, %v462
  %881 = vst [vmem:[%s3 + $0x40] sm:$0xff] %v466
  %882 = vst.msk [vmem:[%s3 + $0x48] sm:$0xff] %vm873, %v468
  %883 = vst [vmem:[%s3 + $0x50] sm:$0xff] %v472
  %884 = vst.msk [vmem:[%s3 + $0x58] sm:$0xff] %vm873, %v474
  %885 = vst [vmem:[%s3 + $0x60] sm:$0xff] %v478
  %886 = vst.msk [vmem:[%s3 + $0x68] sm:$0xff] %vm873, %v480
  %887 = vst [vmem:[%s3 + $0x70] sm:$0xff] %v484
  %888 = vst.msk [vmem:[%s3 + $0x78] sm:$0xff] %vm873, %v486
  %889 = vst [vmem:[%s3 + $0x80] sm:$0xff] %v490
  %890 = vst.msk [vmem:[%s3 + $0x88] sm:$0xff] %vm873, %v492
  %891 = vst [vmem:[%s3 + $0x90] sm:$0xff] %v496
  %892 = vst.msk [vmem:[%s3 + $0x98] sm:$0xff] %vm873, %v498
  %893 = vst [vmem:[%s3 + $0xa0] sm:$0xff] %v502
  %894 = vst.msk [vmem:[%s3 + $0xa8] sm:$0xff] %vm873, %v504
  %895 = vst [vmem:[%s3 + $0xb0] sm:$0xff] %v508
  %896 = vst.msk [vmem:[%s3 + $0xb8] sm:$0xff] %vm873, %v510
  %897 = vst [vmem:[%s3 + $0xc0] sm:$0xff] %v514
  %898 = vst.msk [vmem:[%s3 + $0xc8] sm:$0xff] %vm873, %v516
  %899 = vst [vmem:[%s3 + $0xd0] sm:$0xff] %v520
  %900 = vst.msk [vmem:[%s3 + $0xd8] sm:$0xff] %vm873, %v522
  %901 = vst [vmem:[%s3 + $0xe0] sm:$0xff] %v526
  %902 = vst.msk [vmem:[%s3 + $0xe8] sm:$0xff] %vm873, %v528
  %903 = vst [vmem:[%s3 + $0xf0] sm:$0xff] %v532
  %904 = vst.msk [vmem:[%s3 + $0xf8] sm:$0xff] %vm873, %v534
  %905 = vst [vmem:[%s3 + $0x100] sm:$0xff] %v538
  %906 = vst.msk [vmem:[%s3 + $0x108] sm:$0xff] %vm873, %v540
  %907 = vst [vmem:[%s3 + $0x110] sm:$0xff] %v544
  %908 = vst.msk [vmem:[%s3 + $0x118] sm:$0xff] %vm873, %v546
  %909 = vst [vmem:[%s3 + $0x120] sm:$0xff] %v550
  %910 = vst.msk [vmem:[%s3 + $0x128] sm:$0xff] %vm873, %v552
  %911 = vst [vmem:[%s3 + $0x130] sm:$0xff] %v556
  %912 = vst.msk [vmem:[%s3 + $0x138] sm:$0xff] %vm873, %v558
  %913 = vst [vmem:[%s3 + $0x140] sm:$0xff] %v562
  %914 = vst.msk [vmem:[%s3 + $0x148] sm:$0xff] %vm873, %v564
  %915 = vst [vmem:[%s3 + $0x150] sm:$0xff] %v568
  %916 = vst.msk [vmem:[%s3 + $0x158] sm:$0xff] %vm873, %v570
  %917 = vst [vmem:[%s3 + $0x160] sm:$0xff] %v574
  %918 = vst.msk [vmem:[%s3 + $0x168] sm:$0xff] %vm873, %v576
  %919 = vst [vmem:[%s3 + $0x170] sm:$0xff] %v580
  %920 = vst.msk [vmem:[%s3 + $0x178] sm:$0xff] %vm873, %v582
  %921 = vst [vmem:[%s3 + $0x180] sm:$0xff] %v586
  %922 = vst.msk [vmem:[%s3 + $0x188] sm:$0xff] %vm873, %v588
  %923 = vst [vmem:[%s3 + $0x190] sm:$0xff] %v592
  %924 = vst.msk [vmem:[%s3 + $0x198] sm:$0xff] %vm873, %v594
  %925 = vst [vmem:[%s3 + $0x1a0] sm:$0xff] %v598
  %926 = vst.msk [vmem:[%s3 + $0x1a8] sm:$0xff] %vm873, %v600
  %927 = vst [vmem:[%s3 + $0x1b0] sm:$0xff] %v604
  %928 = vst.msk [vmem:[%s3 + $0x1b8] sm:$0xff] %vm873, %v606
  %929 = vst [vmem:[%s3 + $0x1c0] sm:$0xff] %v610
  %930 = vst.msk [vmem:[%s3 + $0x1c8] sm:$0xff] %vm873, %v612
  %931 = vst [vmem:[%s3 + $0x1d0] sm:$0xff] %v616
  %932 = vst.msk [vmem:[%s3 + $0x1d8] sm:$0xff] %vm873, %v618
  %933 = vst [vmem:[%s3 + $0x1e0] sm:$0xff] %v622
  %934 = vst.msk [vmem:[%s3 + $0x1e8] sm:$0xff] %vm873, %v624
  %935 = vst [vmem:[%s3 + $0x1f0] sm:$0xff] %v628
  %936 = vst.msk [vmem:[%s3 + $0x1f8] sm:$0xff] %vm873, %v630
  %937 = vst [vmem:[%s3 + $0x200] sm:$0xff] %v634
  %938 = vst.msk [vmem:[%s3 + $0x208] sm:$0xff] %vm873, %v636
  %939 = vst [vmem:[%s3 + $0x210] sm:$0xff] %v640
  %940 = vst.msk [vmem:[%s3 + $0x218] sm:$0xff] %vm873, %v642
  %941 = vst [vmem:[%s3 + $0x220] sm:$0xff] %v646
  %942 = vst.msk [vmem:[%s3 + $0x228] sm:$0xff] %vm873, %v648
  %943 = vst [vmem:[%s3 + $0x230] sm:$0xff] %v652
  %944 = vst.msk [vmem:[%s3 + $0x238] sm:$0xff] %vm873, %v654
  %945 = vst [vmem:[%s3 + $0x240] sm:$0xff] %v658
  %946 = vst.msk [vmem:[%s3 + $0x248] sm:$0xff] %vm873, %v660
  %947 = vst [vmem:[%s3 + $0x250] sm:$0xff] %v664
  %948 = vst.msk [vmem:[%s3 + $0x258] sm:$0xff] %vm873, %v666
  %949 = vst [vmem:[%s3 + $0x260] sm:$0xff] %v670
  %950 = vst.msk [vmem:[%s3 + $0x268] sm:$0xff] %vm873, %v672
  %951 = vst [vmem:[%s3 + $0x270] sm:$0xff] %v676
  %952 = vst.msk [vmem:[%s3 + $0x278] sm:$0xff] %vm873, %v678
  %953 = vst [vmem:[%s3 + $0x280] sm:$0xff] %v682
  %954 = vst.msk [vmem:[%s3 + $0x288] sm:$0xff] %vm873, %v684
  %955 = vst [vmem:[%s3 + $0x290] sm:$0xff] %v688
  %956 = vst.msk [vmem:[%s3 + $0x298] sm:$0xff] %vm873, %v690
  %957 = vst [vmem:[%s3 + $0x2a0] sm:$0xff] %v694
  %958 = vst.msk [vmem:[%s3 + $0x2a8] sm:$0xff] %vm873, %v696
  %959 = vst [vmem:[%s3 + $0x2b0] sm:$0xff] %v700
  %960 = vst.msk [vmem:[%s3 + $0x2b8] sm:$0xff] %vm873, %v702
  %961 = vst [vmem:[%s3 + $0x2c0] sm:$0xff] %v706
  %962 = vst.msk [vmem:[%s3 + $0x2c8] sm:$0xff] %vm873, %v708
  %963 = vst [vmem:[%s3 + $0x2d0] sm:$0xff] %v712
  %964 = vst.msk [vmem:[%s3 + $0x2d8] sm:$0xff] %vm873, %v714
  %965 = vst [vmem:[%s3 + $0x2e0] sm:$0xff] %v718
  %966 = vst.msk [vmem:[%s3 + $0x2e8] sm:$0xff] %vm873, %v720
  %967 = vst [vmem:[%s3 + $0x2f0] sm:$0xff] %v724
  %968 = vst.msk [vmem:[%s3 + $0x2f8] sm:$0xff] %vm873, %v726
  %969 = vst [vmem:[%s3 + $0x300] sm:$0xff] %v730
  %970 = vst.msk [vmem:[%s3 + $0x308] sm:$0xff] %vm873, %v732
  %971 = vst [vmem:[%s3 + $0x310] sm:$0xff] %v736
  %972 = vst.msk [vmem:[%s3 + $0x318] sm:$0xff] %vm873, %v738
  %973 = vst [vmem:[%s3 + $0x320] sm:$0xff] %v742
  %974 = vst.msk [vmem:[%s3 + $0x328] sm:$0xff] %vm873, %v744
  %975 = vst [vmem:[%s3 + $0x330] sm:$0xff] %v748
  %976 = vst.msk [vmem:[%s3 + $0x338] sm:$0xff] %vm873, %v750
  %977 = vst [vmem:[%s3 + $0x340] sm:$0xff] %v754
  %978 = vst.msk [vmem:[%s3 + $0x348] sm:$0xff] %vm873, %v756
  %979 = vst [vmem:[%s3 + $0x350] sm:$0xff] %v760
  %980 = vst.msk [vmem:[%s3 + $0x358] sm:$0xff] %vm873, %v762
  %981 = vst [vmem:[%s3 + $0x360] sm:$0xff] %v766
  %982 = vst.msk [vmem:[%s3 + $0x368] sm:$0xff] %vm873, %v768
  %983 = vst [vmem:[%s3 + $0x370] sm:$0xff] %v772
  %984 = vst.msk [vmem:[%s3 + $0x378] sm:$0xff] %vm873, %v774
  %985 = vst [vmem:[%s3 + $0x380] sm:$0xff] %v778
  %986 = vst.msk [vmem:[%s3 + $0x388] sm:$0xff] %vm873, %v780
  %987 = vst [vmem:[%s3 + $0x390] sm:$0xff] %v784
  %988 = vst.msk [vmem:[%s3 + $0x398] sm:$0xff] %vm873, %v786
  %989 = vst [vmem:[%s3 + $0x3a0] sm:$0xff] %v790
  %990 = vst.msk [vmem:[%s3 + $0x3a8] sm:$0xff] %vm873, %v792
  %991 = vst [vmem:[%s3 + $0x3b0] sm:$0xff] %v796
  %992 = vst.msk [vmem:[%s3 + $0x3b8] sm:$0xff] %vm873, %v798
  %993 = vst [vmem:[%s3 + $0x3c0] sm:$0xff] %v802
  %994 = vst.msk [vmem:[%s3 + $0x3c8] sm:$0xff] %vm873, %v804
  %995 = vst [vmem:[%s3 + $0x3d0] sm:$0xff] %v808
  %996 = vst.msk [vmem:[%s3 + $0x3d8] sm:$0xff] %vm873, %v810
  %997 = vst [vmem:[%s3 + $0x3e0] sm:$0xff] %v814
  %998 = vst.msk [vmem:[%s3 + $0x3e8] sm:$0xff] %vm873, %v816
  %999 = vst [vmem:[%s3 + $0x3f0] sm:$0xff] %v820
  %1000 = vst.msk [vmem:[%s3 + $0x3f8] sm:$0xff] %vm873, %v822
  %1001 = vst [vmem:[%s3 + $0x400] sm:$0xff] %v826
  %1002 = vst.msk [vmem:[%s3 + $0x408] sm:$0xff] %vm873, %v828
  %1003 = vst [vmem:[%s3 + $0x410] sm:$0xff] %v832
  %1004 = vst.msk [vmem:[%s3 + $0x418] sm:$0xff] %vm873, %v834
  %1005 = vst [vmem:[%s3 + $0x420] sm:$0xff] %v838
  %1006 = vst.msk [vmem:[%s3 + $0x428] sm:$0xff] %vm873, %v840
  %1007 = vst [vmem:[%s3 + $0x430] sm:$0xff] %v844
  %1008 = vst.msk [vmem:[%s3 + $0x438] sm:$0xff] %vm873, %v846
  %1009 = vst [vmem:[%s3 + $0x440] sm:$0xff] %v850
  %1010 = vst.msk [vmem:[%s3 + $0x448] sm:$0xff] %vm873, %v852
  %1011 = vst [vmem:[%s3 + $0x450] sm:$0xff] %v856
  %1012 = vst.msk [vmem:[%s3 + $0x458] sm:$0xff] %vm873, %v858
  %1013 = vst [vmem:[%s3 + $0x460] sm:$0xff] %v862
  %1014 = vst.msk [vmem:[%s3 + $0x468] sm:$0xff] %vm873, %v864
  %1015 = vst [vmem:[%s3 + $0x470] sm:$0xff] %v868
  %1016 = vst.msk [vmem:[%s3 + $0x478] sm:$0xff] %vm873, %v870
  // Predicated region
  $region14: #{tpu_custom_call.1} parent=0 // pred_check
    _
  $region15: #{tpu_custom_call.1} parent=0 // pred_check_branch
    %1018 = sbr.rel (0) target = $region17
  $region16: #{tpu_custom_call.1} parent=0 // pred_region
    _
  $region17: #{tpu_custom_call.1} parent=0 // pred_fallthru
    _
  // Predicated region
  $region18: #{tpu_custom_call.1} parent=0 // pred_check
    _
  $region19: #{tpu_custom_call.1} parent=0 // pred_check_branch
    %1020 = sbr.rel (0) target = $region21
  $region20: #{tpu_custom_call.1} parent=0 // pred_region
    _
  $region21: #{tpu_custom_call.1} parent=0 // pred_fallthru
    _

</llo_original>
